<compile_context>
chip_gen: v6e
topology: v6e:2x2x1
jax: 0.10.0
libtpu: 0.0.40
codegen_flags: <defaults>
</compile_context>

<pallas_src>
import jax
import jax.numpy as jnp
from jax.experimental import pallas as pl
from jax.experimental.pallas import tpu as pltpu


def _round_up(x, m):
    return ((x + m - 1) // m) * m


def _pad2(a, rows, cols):
    pr, pc = rows - a.shape[0], cols - a.shape[1]
    if pr or pc:
        a = jnp.pad(a, ((0, pr), (0, pc)))
    return a


def qnetwork_kernel(x_ref,
                    w1_ref, b1_ref,
                    w2_ref, b2_ref,
                    w3_ref, b3_ref,
                    w4_ref, b4_ref,
                    out_ref):
    """Fused forward: relu(relu(relu(x@W1+b1)@W2+b2)@W3+b3)@W4+b4.

    Layer 1 runs in f32 (x and W1 are f32, W1 is tiny). Layers 2-4 use bf16
    MXU operands with f32 accumulation. Bias add + ReLU stay in f32 (v5e's
    VPU has no bf16).
    """
    # Layer 1 (f32 operands, f32 accumulate).
    h = jnp.dot(x_ref[...], w1_ref[...], preferred_element_type=jnp.float32)
    h = jnp.maximum(h + b1_ref[...], 0.0)

    # Layer 2.
    h = jnp.dot(h.astype(jnp.bfloat16), w2_ref[...],
                preferred_element_type=jnp.float32)
    h = jnp.maximum(h + b2_ref[...], 0.0)

    # Layer 3.
    h = jnp.dot(h.astype(jnp.bfloat16), w3_ref[...],
                preferred_element_type=jnp.float32)
    h = jnp.maximum(h + b3_ref[...], 0.0)

    # Layer 4 (no ReLU).
    h = jnp.dot(h.astype(jnp.bfloat16), w4_ref[...],
                preferred_element_type=jnp.float32)
    h = h + b4_ref[...]

    out_ref[...] = h.astype(out_ref.dtype)


def prepare_params(params):
    """One-time weight prep (hoisted out of the forward pass).

    Pads the hidden/output feature dims to lane-dense multiples of 128 and
    casts W2..W4 to bf16. W1 stays f32 (unpadded K = input_dim): it is tiny
    and keeps layer 1 at full precision. Zero padding is semantics-preserving:
    padded hidden units get bias 0 -> relu(0) = 0, and the padded rows of the
    next layer's weights multiply zeros.
    """
    d_in, d_h = params["w1"].shape
    d_out = params["w4"].shape[1]
    d_h_p = _round_up(d_h, 128)
    d_out_p = _round_up(d_out, 128)

    prepped = {
        "w1": _pad2(params["w1"].astype(jnp.float32), d_in, d_h_p),
        "b1": _pad2(params["b1"].astype(jnp.float32), 1, d_h_p),
        "w2": _pad2(params["w2"].astype(jnp.float32), d_h_p, d_h_p).astype(jnp.bfloat16),
        "b2": _pad2(params["b2"].astype(jnp.float32), 1, d_h_p),
        "w3": _pad2(params["w3"].astype(jnp.float32), d_h_p, d_h_p).astype(jnp.bfloat16),
        "b3": _pad2(params["b3"].astype(jnp.float32), 1, d_h_p),
        "w4": _pad2(params["w4"].astype(jnp.float32), d_h_p, d_out_p).astype(jnp.bfloat16),
        "b4": _pad2(params["b4"].astype(jnp.float32), 1, d_out_p),
        "d_out": int(d_out),  # true output width (static)
    }
    return prepped


def qnetwork_forward(x, prepped, *, block_b=512, out_dtype=jnp.float32):
    """Forward pass using pre-prepared (padded/cast) parameters.

    x: [B, input_dim] (any float dtype; used as f32, matching the PyTorch
    module which casts x to the weight dtype).
    Returns [B, output_dim] in out_dtype (default f32).
    """
    B, d_in = x.shape
    d_h_p = prepped["w1"].shape[1]
    d_out_p = prepped["w4"].shape[1]
    d_out = prepped["d_out"]
    assert prepped["w1"].shape[0] == d_in, "input_dim mismatch with prepared params"

    # Batch tile: multiple of 16 (bf16 sublane packing). Cap it so that any
    # batch big enough to split gets >= 2 grid steps (v7x megacore); a no-op
    # on v5e/v6e (1 TC).
    TB = min(block_b, _round_up(B, 16))
    if B > 16:
        TB = min(TB, _round_up((B + 1) // 2, 16))
    B_p = _round_up(B, TB)
    n_blocks = B_p // TB

    x = x.astype(jnp.float32)
    if B_p != B:
        x = jnp.pad(x, ((0, B_p - B), (0, 0)))

    # Weights/biases: whole-array, single-buffered, VMEM-resident across the
    # batch grid. Activations: batch-tiled, auto double-buffered.
    resident = pl.BlockSpec(memory_space=pltpu.MemorySpace.VMEM)
    in_specs = [
        pl.BlockSpec((TB, d_in), lambda i: (i, 0)),   # x (true feature dim)
        resident, resident,                            # w1, b1
        resident, resident,                            # w2, b2
        resident, resident,                            # w3, b3
        resident, resident,                            # w4, b4
    ]
    out_specs = pl.BlockSpec((TB, d_out_p), lambda i: (i, 0))

    out_itemsize = jnp.dtype(out_dtype).itemsize
    # VMEM budget with actual buffer counts: single-buffered weights/biases,
    # double-buffered x/out blocks, a few f32 (TB, d_h_p) intermediates.
    w_bytes = (4 * d_in * d_h_p
               + 2 * (2 * d_h_p * d_h_p + d_h_p * d_out_p))
    b_bytes = 4 * (3 * d_h_p + d_out_p)
    io_bytes = 2 * TB * d_in * 4 + 2 * TB * d_out_p * out_itemsize
    act_bytes = 6 * TB * d_h_p * 4
    budget = w_bytes + b_bytes + io_bytes + act_bytes
    vmem_limit = int(min(max(int(1.5 * budget), 16 * 2**20), 40 * 2**20))

    flops = 2 * B_p * (d_in * d_h_p + 2 * d_h_p * d_h_p + d_h_p * d_out_p)
    bytes_accessed = (B_p * d_in * 4 + w_bytes + b_bytes
                      + B_p * d_out_p * out_itemsize)

    out_padded = pl.pallas_call(
        qnetwork_kernel,
        out_shape=jax.ShapeDtypeStruct((B_p, d_out_p), out_dtype),
        grid_spec=pltpu.PrefetchScalarGridSpec(
            num_scalar_prefetch=0,
            grid=(n_blocks,),
            in_specs=in_specs,
            out_specs=out_specs,
        ),
        compiler_params=pltpu.CompilerParams(
            dimension_semantics=("parallel",),
            vmem_limit_bytes=vmem_limit,
        ),
        cost_estimate=pl.CostEstimate(
            flops=flops, transcendentals=0, bytes_accessed=bytes_accessed),
    )(x,
      prepped["w1"], prepped["b1"],
      prepped["w2"], prepped["b2"],
      prepped["w3"], prepped["b3"],
      prepped["w4"], prepped["b4"])

    return out_padded[:B, :d_out]


def init_params(key, input_dim, hidden_dim, output_dim):
    """Deterministic synthetic init (Kaiming-uniform-ish), PyTorch Linear shapes
    transposed to [in, out]."""
    dims = [(input_dim, hidden_dim),
            (hidden_dim, hidden_dim),
            (hidden_dim, hidden_dim),
            (hidden_dim, output_dim)]
    params = {}
    for i, (fan_in, fan_out) in enumerate(dims, start=1):
        key, kw, kb = jax.random.split(key, 3)
        bound = 1.0 / jnp.sqrt(fan_in)
        params[f"w{i}"] = jax.random.uniform(
            kw, (fan_in, fan_out), jnp.float32, -bound, bound)
        params[f"b{i}"] = jax.random.uniform(
            kb, (1, fan_out), jnp.float32, -bound, bound)
    return params


def reference_forward(x, params):
    """Pure-JAX f32 reference mirroring the PyTorch forward."""
    h = jnp.maximum(x @ params["w1"] + params["b1"], 0.0)
    h = jnp.maximum(h @ params["w2"] + params["b2"], 0.0)
    h = jnp.maximum(h @ params["w3"] + params["b3"], 0.0)
    return h @ params["w4"] + params["b4"]


if __name__ == "__main__":
    key = jax.random.PRNGKey(0)
    batch, input_dim, hidden_dim, output_dim = 8, 16, 32, 4

    key, kx = jax.random.split(key)
    x = jax.random.normal(kx, (batch, input_dim), jnp.float32)
    params = init_params(key, input_dim, hidden_dim, output_dim)

    # One-time weight prep (pad + cast), hoisted out of the forward pass.
    prepped = jax.block_until_ready(prepare_params(params))

    out = qnetwork_forward(x, prepped)
    out = jax.block_until_ready(out)

    ref = reference_forward(x, params)
    assert out.shape == (batch, output_dim)
    # Layer 1 is f32; layers 2-4 use bf16 MXU operands with f32 accumulation,
    # so compare against the f32 reference with a loose tolerance.
    assert jnp.allclose(out, ref, atol=5e-2, rtol=5e-2), "mismatch vs reference"

    print("KERNEL_OK")
</pallas_src>

<mosaic_0001>
module attributes {stable_mosaic.version = 11 : i64} {
  func.func @qnetwork_kernel(%arg0: i32, %arg1: memref<16x16xf32, #tpu.memory_space<vmem>>, %arg2: memref<16x128xf32, #tpu.memory_space<vmem>>, %arg3: memref<1x128xf32, #tpu.memory_space<vmem>>, %arg4: memref<128x128xbf16, #tpu.memory_space<vmem>>, %arg5: memref<1x128xf32, #tpu.memory_space<vmem>>, %arg6: memref<128x128xbf16, #tpu.memory_space<vmem>>, %arg7: memref<1x128xf32, #tpu.memory_space<vmem>>, %arg8: memref<128x128xbf16, #tpu.memory_space<vmem>>, %arg9: memref<1x128xf32, #tpu.memory_space<vmem>>, %arg10: memref<16x128xf32, #tpu.memory_space<vmem>>) attributes {dimension_semantics = [#tpu.dimension_semantics<parallel>], iteration_bounds = array<i64: 1>, scalar_prefetch = 0 : i64, scratch_operands = 0 : i64, tpu.core_type = #tpu.core_type<tc>, window_params = [{transform_indices = @transform_0, window_bounds = array<i64: 16, 16>}, {pipeline_mode = #tpu.pipeline_mode<synchronous>, transform_indices = @transform_1, window_bounds = array<i64: 16, 128>}, {pipeline_mode = #tpu.pipeline_mode<synchronous>, transform_indices = @transform_2, window_bounds = array<i64: 1, 128>}, {pipeline_mode = #tpu.pipeline_mode<synchronous>, transform_indices = @transform_3, window_bounds = array<i64: 128, 128>}, {pipeline_mode = #tpu.pipeline_mode<synchronous>, transform_indices = @transform_4, window_bounds = array<i64: 1, 128>}, {pipeline_mode = #tpu.pipeline_mode<synchronous>, transform_indices = @transform_5, window_bounds = array<i64: 128, 128>}, {pipeline_mode = #tpu.pipeline_mode<synchronous>, transform_indices = @transform_6, window_bounds = array<i64: 1, 128>}, {pipeline_mode = #tpu.pipeline_mode<synchronous>, transform_indices = @transform_7, window_bounds = array<i64: 128, 128>}, {pipeline_mode = #tpu.pipeline_mode<synchronous>, transform_indices = @transform_8, window_bounds = array<i64: 1, 128>}, {transform_indices = @transform_9, window_bounds = array<i64: 16, 128>}]} {
    %c0 = arith.constant 0 : index
    %c0_0 = arith.constant 0 : index
    %0 = vector.load %arg1[%c0, %c0_0] : memref<16x16xf32, #tpu.memory_space<vmem>>, vector<16x16xf32>
    %c0_1 = arith.constant 0 : index
    %c0_2 = arith.constant 0 : index
    %1 = vector.load %arg2[%c0_1, %c0_2] : memref<16x128xf32, #tpu.memory_space<vmem>>, vector<16x128xf32>
    %cst = arith.constant dense<0.000000e+00> : vector<16x128xf32>
    %2 = tpu.matmul %0, %1, %cst {dimension_numbers = #tpu.dot_dimension_numbers<[1], [0], [0], [1], [0, 0, 1, 1], [], []>} : vector<16x16xf32>, vector<16x128xf32>, vector<16x128xf32> -> vector<16x128xf32>
    %c0_3 = arith.constant 0 : index
    %c0_4 = arith.constant 0 : index
    %3 = vector.load %arg3[%c0_3, %c0_4] : memref<1x128xf32, #tpu.memory_space<vmem>>, vector<1x128xf32>
    %4 = vector.broadcast %3 : vector<1x128xf32> to vector<16x128xf32>
    %5 = arith.addf %2, %4 : vector<16x128xf32>
    %cst_5 = arith.constant 0.000000e+00 : f32
    %6 = vector.broadcast %cst_5 : f32 to vector<16x128xf32>
    %7 = arith.maximumf %5, %6 : vector<16x128xf32>
    %8 = arith.truncf %7 : vector<16x128xf32> to vector<16x128xbf16>
    %c0_6 = arith.constant 0 : index
    %c0_7 = arith.constant 0 : index
    %9 = vector.load %arg4[%c0_6, %c0_7] : memref<128x128xbf16, #tpu.memory_space<vmem>>, vector<128x128xbf16>
    %cst_8 = arith.constant dense<0.000000e+00> : vector<16x128xf32>
    %10 = tpu.matmul %8, %9, %cst_8 {dimension_numbers = #tpu.dot_dimension_numbers<[1], [0], [0], [1], [0, 0, 1, 1], [], []>} : vector<16x128xbf16>, vector<128x128xbf16>, vector<16x128xf32> -> vector<16x128xf32>
    %c0_9 = arith.constant 0 : index
    %c0_10 = arith.constant 0 : index
    %11 = vector.load %arg5[%c0_9, %c0_10] : memref<1x128xf32, #tpu.memory_space<vmem>>, vector<1x128xf32>
    %12 = vector.broadcast %11 : vector<1x128xf32> to vector<16x128xf32>
    %13 = arith.addf %10, %12 : vector<16x128xf32>
    %cst_11 = arith.constant 0.000000e+00 : f32
    %14 = vector.broadcast %cst_11 : f32 to vector<16x128xf32>
    %15 = arith.maximumf %13, %14 : vector<16x128xf32>
    %16 = arith.truncf %15 : vector<16x128xf32> to vector<16x128xbf16>
    %c0_12 = arith.constant 0 : index
    %c0_13 = arith.constant 0 : index
    %17 = vector.load %arg6[%c0_12, %c0_13] : memref<128x128xbf16, #tpu.memory_space<vmem>>, vector<128x128xbf16>
    %cst_14 = arith.constant dense<0.000000e+00> : vector<16x128xf32>
    %18 = tpu.matmul %16, %17, %cst_14 {dimension_numbers = #tpu.dot_dimension_numbers<[1], [0], [0], [1], [0, 0, 1, 1], [], []>} : vector<16x128xbf16>, vector<128x128xbf16>, vector<16x128xf32> -> vector<16x128xf32>
    %c0_15 = arith.constant 0 : index
    %c0_16 = arith.constant 0 : index
    %19 = vector.load %arg7[%c0_15, %c0_16] : memref<1x128xf32, #tpu.memory_space<vmem>>, vector<1x128xf32>
    %20 = vector.broadcast %19 : vector<1x128xf32> to vector<16x128xf32>
    %21 = arith.addf %18, %20 : vector<16x128xf32>
    %cst_17 = arith.constant 0.000000e+00 : f32
    %22 = vector.broadcast %cst_17 : f32 to vector<16x128xf32>
    %23 = arith.maximumf %21, %22 : vector<16x128xf32>
    %24 = arith.truncf %23 : vector<16x128xf32> to vector<16x128xbf16>
    %c0_18 = arith.constant 0 : index
    %c0_19 = arith.constant 0 : index
    %25 = vector.load %arg8[%c0_18, %c0_19] : memref<128x128xbf16, #tpu.memory_space<vmem>>, vector<128x128xbf16>
    %cst_20 = arith.constant dense<0.000000e+00> : vector<16x128xf32>
    %26 = tpu.matmul %24, %25, %cst_20 {dimension_numbers = #tpu.dot_dimension_numbers<[1], [0], [0], [1], [0, 0, 1, 1], [], []>} : vector<16x128xbf16>, vector<128x128xbf16>, vector<16x128xf32> -> vector<16x128xf32>
    %c0_21 = arith.constant 0 : index
    %c0_22 = arith.constant 0 : index
    %27 = vector.load %arg9[%c0_21, %c0_22] : memref<1x128xf32, #tpu.memory_space<vmem>>, vector<1x128xf32>
    %28 = vector.broadcast %27 : vector<1x128xf32> to vector<16x128xf32>
    %29 = arith.addf %26, %28 : vector<16x128xf32>
    %c0_23 = arith.constant 0 : index
    %c0_24 = arith.constant 0 : index
    %30 = vector.load %arg10[%c0_23, %c0_24] : memref<16x128xf32, #tpu.memory_space<vmem>>, vector<16x128xf32>
    tpu.vector_store %arg10[%c0_23, %c0_24], %29 {strides = array<i32>} : memref<16x128xf32, #tpu.memory_space<vmem>>, vector<16x128xf32>,
    return
  }
  func.func @transform_0(%arg0: i32) -> (i32, i32) {
    %c0_i32 = arith.constant 0 : i32
    %c0_i32_0 = arith.constant 0 : i32
    return %arg0, %c0_i32 : i32, i32
  }
  func.func @transform_1(%arg0: i32) -> (i32, i32) {
    %c0_i32 = arith.constant 0 : i32
    %c0_i32_0 = arith.constant 0 : i32
    %c0_i32_1 = arith.constant 0 : i32
    return %c0_i32, %c0_i32_0 : i32, i32
  }
  func.func @transform_2(%arg0: i32) -> (i32, i32) {
    %c0_i32 = arith.constant 0 : i32
    %c0_i32_0 = arith.constant 0 : i32
    %c0_i32_1 = arith.constant 0 : i32
    return %c0_i32, %c0_i32_0 : i32, i32
  }
  func.func @transform_3(%arg0: i32) -> (i32, i32) {
    %c0_i32 = arith.constant 0 : i32
    %c0_i32_0 = arith.constant 0 : i32
    %c0_i32_1 = arith.constant 0 : i32
    return %c0_i32, %c0_i32_0 : i32, i32
  }
  func.func @transform_4(%arg0: i32) -> (i32, i32) {
    %c0_i32 = arith.constant 0 : i32
    %c0_i32_0 = arith.constant 0 : i32
    %c0_i32_1 = arith.constant 0 : i32
    return %c0_i32, %c0_i32_0 : i32, i32
  }
  func.func @transform_5(%arg0: i32) -> (i32, i32) {
    %c0_i32 = arith.constant 0 : i32
    %c0_i32_0 = arith.constant 0 : i32
    %c0_i32_1 = arith.constant 0 : i32
    return %c0_i32, %c0_i32_0 : i32, i32
  }
  func.func @transform_6(%arg0: i32) -> (i32, i32) {
    %c0_i32 = arith.constant 0 : i32
    %c0_i32_0 = arith.constant 0 : i32
    %c0_i32_1 = arith.constant 0 : i32
    return %c0_i32, %c0_i32_0 : i32, i32
  }
  func.func @transform_7(%arg0: i32) -> (i32, i32) {
    %c0_i32 = arith.constant 0 : i32
    %c0_i32_0 = arith.constant 0 : i32
    %c0_i32_1 = arith.constant 0 : i32
    return %c0_i32, %c0_i32_0 : i32, i32
  }
  func.func @transform_8(%arg0: i32) -> (i32, i32) {
    %c0_i32 = arith.constant 0 : i32
    %c0_i32_0 = arith.constant 0 : i32
    %c0_i32_1 = arith.constant 0 : i32
    return %c0_i32, %c0_i32_0 : i32, i32
  }
  func.func @transform_9(%arg0: i32) -> (i32, i32) {
    %c0_i32 = arith.constant 0 : i32
    %c0_i32_0 = arith.constant 0 : i32
    return %arg0, %c0_i32 : i32, i32
  }
}

</mosaic_0001>

<llo_original>
// kernel: tpu_custom_call.1
$region0: #{tpu_custom_call.1}
  #allocation0 [shape = 'u32[]', space=smem, size = 0x4, offset = 0x4, fixed_abs, tag = 'smem constant byte address 0x4 - core index']
  #allocation1 [shape = 'u32[144,128]{1,0:T(1,128)}', space=vmem, size = 0x12000, scoped, tag = 'internal scratch']
  %s0 = inlined_call_operand.hbm [shape: f32[16,16], index: 0, kind: input, shape index: {}]
  %s1 = inlined_call_operand.hbm [shape: f32[16,128], index: 1, kind: input, shape index: {}]
  %s2 = inlined_call_operand.vmem [shape: f32[1,128], index: 2, kind: input, shape index: {}]
  %s3 = inlined_call_operand.hbm [shape: bf16[128,128], index: 3, kind: input, shape index: {}]
  %s4 = inlined_call_operand.vmem [shape: f32[1,128], index: 4, kind: input, shape index: {}]
  %s5 = inlined_call_operand.hbm [shape: bf16[128,128], index: 5, kind: input, shape index: {}]
  %s6 = inlined_call_operand.vmem [shape: f32[1,128], index: 6, kind: input, shape index: {}]
  %s7 = inlined_call_operand.hbm [shape: bf16[128,128], index: 7, kind: input, shape index: {}]
  %s8 = inlined_call_operand.vmem [shape: f32[1,128], index: 8, kind: input, shape index: {}]
  %s9 = inlined_call_operand.hbm [shape: f32[16,128], index: 9, kind: output, shape index: {}]
  %s10 = sld [smem:[#allocation0]]
  $region66: #{tpu_custom_call.1} parent=0
    _
  %s12 = ssub.s32 1, %s10
  %s13 = scalar_select 0, %s12, %s10
  $region1: #{tpu_custom_call.1} parent=0
    #allocation2 [shape = 'u8[8192]{0}', space=vmem, size = 0x2000, scoped, tag = 'input window, operand 0, single buffered']
    #allocation3 [shape = 's32[1]{0}', space=sflag, size = 0x4, scoped, tag = 'scoped memory for tpu_custom_call.1']
    #allocation4 [shape = 's32[1]{0}', space=sflag, size = 0x4, scoped, tag = 'scoped memory for tpu_custom_call.1']
    #allocation5 [shape = 'u8[8192]{0}', space=vmem, size = 0x2000, scoped, tag = 'input window, operand 1, single buffered']
    #allocation6 [shape = 's32[1]{0}', space=sflag, size = 0x4, scoped, tag = 'scoped memory for tpu_custom_call.1']
    #allocation7 [shape = 'u8[32768]{0}', space=vmem, size = 0x8000, scoped, tag = 'input window, operand 3, single buffered']
    #allocation8 [shape = 'u8[32768]{0}', space=vmem, size = 0x8000, scoped, tag = 'input window, operand 5, single buffered']
    #allocation9 [shape = 's32[1]{0}', space=sflag, size = 0x4, scoped, tag = 'scoped memory for tpu_custom_call.1']
    #allocation10 [shape = 'u8[32768]{0}', space=vmem, size = 0x8000, scoped, tag = 'input window, operand 7, single buffered']
    #allocation11 [shape = 'u8[8192]{0}', space=vmem, size = 0x2000, scoped, tag = 'output window, operand 0, single buffered']
    %14 = vsyncpa [#allocation3], 0
    %15 = vsyncpa [#allocation6], 0
    %16 = vsyncpa [#allocation9], 0
    %17 = vsyncpa [#allocation4], 0
    // Predicated region
    $region2: #{tpu_custom_call.1} parent=1 // pred_check
      _
    $region3: #{tpu_custom_call.1} parent=1 // pred_check_branch
      %19 = sbr.rel (0) target = $region5
    $region4: #{tpu_custom_call.1} parent=1 // pred_region
      %s21 = ssub.s32 256, 256
      %22 = vsyncadd [#allocation3], %s21
      %s23 = sshll.u32 [#allocation2], 4
      %s24 = int_to_ptr.vmem [resolvable:$true] %s23
      %29 = dma.hbm_to_vmem [thread:$0]  %s0, 256, %s24, [#allocation3], 128, 128, 8
    $region5: #{tpu_custom_call.1} parent=1 // pred_fallthru
      _
    // Predicated region
    $region6: #{tpu_custom_call.1} parent=1 // pred_check
      _
    $region7: #{tpu_custom_call.1} parent=1 // pred_check_branch
      %31 = sbr.rel (0) target = $region9
    $region8: #{tpu_custom_call.1} parent=1 // pred_region
      %s33 = ssub.s32 256, 256
      %34 = vsyncadd [#allocation6], %s33
      %s35 = sshll.u32 [#allocation5], 4
      %s36 = int_to_ptr.vmem [resolvable:$true] %s35
      %41 = dma.hbm_to_vmem [thread:$0]  %s1, 256, %s36, [#allocation6], 128, 128, 8
    $region9: #{tpu_custom_call.1} parent=1 // pred_fallthru
      _
    // Predicated region
    $region10: #{tpu_custom_call.1} parent=1 // pred_check
      _
    $region11: #{tpu_custom_call.1} parent=1 // pred_check_branch
      %43 = sbr.rel (0) target = $region13
    $region12: #{tpu_custom_call.1} parent=1 // pred_region
      _
    $region13: #{tpu_custom_call.1} parent=1 // pred_fallthru
      _
    // Predicated region
    $region14: #{tpu_custom_call.1} parent=1 // pred_check
      _
    $region15: #{tpu_custom_call.1} parent=1 // pred_check_branch
      %45 = sbr.rel (0) target = $region17
    $region16: #{tpu_custom_call.1} parent=1 // pred_region
      %s47 = ssub.s32 1024, 1024
      %48 = vsyncadd [#allocation6], %s47
      %s49 = sshll.u32 [#allocation7], 4
      %s50 = int_to_ptr.vmem [resolvable:$true] %s49
      %55 = dma.hbm_to_vmem [thread:$0]  %s3, 1024, %s50, [#allocation6], 64, 64, 4
    $region17: #{tpu_custom_call.1} parent=1 // pred_fallthru
      _
    // Predicated region
    $region18: #{tpu_custom_call.1} parent=1 // pred_check
      _
    $region19: #{tpu_custom_call.1} parent=1 // pred_check_branch
      %57 = sbr.rel (0) target = $region21
    $region20: #{tpu_custom_call.1} parent=1 // pred_region
      _
    $region21: #{tpu_custom_call.1} parent=1 // pred_fallthru
      _
    // Predicated region
    $region22: #{tpu_custom_call.1} parent=1 // pred_check
      _
    $region23: #{tpu_custom_call.1} parent=1 // pred_check_branch
      %59 = sbr.rel (0) target = $region25
    $region24: #{tpu_custom_call.1} parent=1 // pred_region
      %s61 = ssub.s32 1024, 1024
      %62 = vsyncadd [#allocation9], %s61
      %s63 = sshll.u32 [#allocation8], 4
      %s64 = int_to_ptr.vmem [resolvable:$true] %s63
      %69 = dma.hbm_to_vmem [thread:$0]  %s5, 1024, %s64, [#allocation9], 64, 64, 4
    $region25: #{tpu_custom_call.1} parent=1 // pred_fallthru
      _
    // Predicated region
    $region26: #{tpu_custom_call.1} parent=1 // pred_check
      _
    $region27: #{tpu_custom_call.1} parent=1 // pred_check_branch
      %71 = sbr.rel (0) target = $region29
    $region28: #{tpu_custom_call.1} parent=1 // pred_region
      _
    $region29: #{tpu_custom_call.1} parent=1 // pred_fallthru
      _
    // Predicated region
    $region30: #{tpu_custom_call.1} parent=1 // pred_check
      _
    $region31: #{tpu_custom_call.1} parent=1 // pred_check_branch
      %73 = sbr.rel (0) target = $region33
    $region32: #{tpu_custom_call.1} parent=1 // pred_region
      %s75 = ssub.s32 1024, 1024
      %76 = vsyncadd [#allocation9], %s75
      %s77 = sshll.u32 [#allocation10], 4
      %s78 = int_to_ptr.vmem [resolvable:$true] %s77
      %83 = dma.hbm_to_vmem [thread:$0]  %s7, 1024, %s78, [#allocation9], 64, 64, 4
    $region33: #{tpu_custom_call.1} parent=1 // pred_fallthru
      _
    // Predicated region
    $region34: #{tpu_custom_call.1} parent=1 // pred_check
      _
    $region35: #{tpu_custom_call.1} parent=1 // pred_check_branch
      %85 = sbr.rel (0) target = $region37
    $region36: #{tpu_custom_call.1} parent=1 // pred_region
      _
    $region37: #{tpu_custom_call.1} parent=1 // pred_fallthru
      _
    // Predicated region
    $region38: #{tpu_custom_call.1} parent=1 // pred_check
      _
    $region39: #{tpu_custom_call.1} parent=1 // pred_check_branch
      %87 = sbr.rel (0) target = $region41
    $region40: #{tpu_custom_call.1} parent=1 // pred_region
      %88 = dma.done [#allocation3], 256
    $region41: #{tpu_custom_call.1} parent=1 // pred_fallthru
      _
    // Predicated region
    $region42: #{tpu_custom_call.1} parent=1 // pred_check
      _
    $region43: #{tpu_custom_call.1} parent=1 // pred_check_branch
      %90 = sbr.rel (0) target = $region45
    $region44: #{tpu_custom_call.1} parent=1 // pred_region
      %91 = dma.done [#allocation6], 256
    $region45: #{tpu_custom_call.1} parent=1 // pred_fallthru
      _
    // Predicated region
    $region46: #{tpu_custom_call.1} parent=1 // pred_check
      _
    $region47: #{tpu_custom_call.1} parent=1 // pred_check_branch
      %93 = sbr.rel (0) target = $region49
    $region48: #{tpu_custom_call.1} parent=1 // pred_region
      %94 = dma.done [#allocation6], 1024
    $region49: #{tpu_custom_call.1} parent=1 // pred_fallthru
      _
    // Predicated region
    $region50: #{tpu_custom_call.1} parent=1 // pred_check
      _
    $region51: #{tpu_custom_call.1} parent=1 // pred_check_branch
      %96 = sbr.rel (0) target = $region53
    $region52: #{tpu_custom_call.1} parent=1 // pred_region
      %97 = dma.done [#allocation9], 1024
    $region53: #{tpu_custom_call.1} parent=1 // pred_fallthru
      _
    // Predicated region
    $region54: #{tpu_custom_call.1} parent=1 // pred_check
      _
    $region55: #{tpu_custom_call.1} parent=1 // pred_check_branch
      %99 = sbr.rel (0) target = $region57
    $region56: #{tpu_custom_call.1} parent=1 // pred_region
      %100 = dma.done [#allocation9], 1024
    $region57: #{tpu_custom_call.1} parent=1 // pred_fallthru
      _
    %v102 = vld [vmem:[#allocation2] sm:$0xff]
    %v103 = vld [vmem:[#allocation2 + $0x8] sm:$0xff]
    %v104 = vld [vmem:[#allocation5] sm:$0xff]
    %v105 = vld [vmem:[#allocation5 + $0x8] sm:$0xff]
    %v106 = vld [vmem:[%s2] sm:$0x1]
    %v108 = vlaneseq
    %v109 = vshrl.u32 %v108, 7
    %v110 = vsub.s32 0, %v109
    %v111 = vrot.slane %v106, %v110
    %vm113 = vcmask 130048
    %v115 = vsel %vm113, %v102, 0
    %v118 = vsel %vm113, %v103, 0
    %120 = vmatprep.subr.mxu0 0.0
    %121 = vmatpush1.msra.mxu0 0.0
    %122 = vmatprep.subr.mxu0 0.0
    %123 = vmatpush1.msra.mxu0 0.0
    %124 = vmatprep.subr.mxu0 0.0
    %125 = vmatpush1.msra.mxu0 0.0
    %126 = vmatprep.subr.mxu0 0.0
    %127 = vmatpush1.msra.mxu0 0.0
    %128 = vmatprep.subr.mxu0 0.0
    %129 = vmatpush1.msra.mxu0 0.0
    %130 = vmatprep.subr.mxu0 0.0
    %131 = vmatpush1.msra.mxu0 0.0
    %132 = vmatprep.subr.mxu0 0.0
    %133 = vmatpush1.msra.mxu0 0.0
    %134 = vmatprep.subr.mxu0 0.0
    %135 = vmatpush1.msra.mxu0 0.0
    %136 = vmatprep.subr.mxu0 0.0
    %137 = vmatpush1.msra.mxu0 0.0
    %138 = vmatprep.subr.mxu0 0.0
    %139 = vmatpush1.msra.mxu0 0.0
    %140 = vmatprep.subr.mxu0 0.0
    %141 = vmatpush1.msra.mxu0 0.0
    %142 = vmatprep.subr.mxu0 0.0
    %143 = vmatpush1.msra.mxu0 0.0
    %144 = vmatprep.subr.mxu0 0.0
    %145 = vmatpush1.msra.mxu0 0.0
    %146 = vmatprep.subr.mxu0 0.0
    %147 = vmatpush1.msra.mxu0 0.0
    %148 = vmatprep.subr.mxu0 0.0
    %149 = vmatpush1.msra.mxu0 %v105
    %150 = vmatprep.subr.mxu0 0.0
    %151 = vmatpush1.msra.mxu0 %v104
    %152 = vmatprep.subr.mxu0 0.0
    %153 = vmatpush2.msra.mxu0 0.0
    %154 = vmatprep.subr.mxu0 0.0
    %155 = vmatpush2.msra.mxu0 0.0
    %156 = vmatprep.subr.mxu0 0.0
    %157 = vmatpush2.msra.mxu0 0.0
    %158 = vmatprep.subr.mxu0 0.0
    %159 = vmatpush2.msra.mxu0 0.0
    %160 = vmatprep.subr.mxu0 0.0
    %161 = vmatpush2.msra.mxu0 0.0
    %162 = vmatprep.subr.mxu0 0.0
    %163 = vmatpush2.msra.mxu0 0.0
    %164 = vmatprep.subr.mxu0 0.0
    %165 = vmatpush2.msra.mxu0 0.0
    %166 = vmatprep.subr.mxu0 0.0
    %167 = vmatpush2.msra.mxu0 0.0
    %168 = vmatprep.subr.mxu0 0.0
    %169 = vmatpush2.msra.mxu0 0.0
    %170 = vmatprep.subr.mxu0 0.0
    %171 = vmatpush2.msra.mxu0 0.0
    %172 = vmatprep.subr.mxu0 0.0
    %173 = vmatpush2.msra.mxu0 0.0
    %174 = vmatprep.subr.mxu0 0.0
    %175 = vmatpush2.msra.mxu0 0.0
    %176 = vmatprep.subr.mxu0 0.0
    %177 = vmatpush2.msra.mxu0 0.0
    %178 = vmatprep.subr.mxu0 0.0
    %179 = vmatpush2.msra.mxu0 0.0
    %180 = vmatprep.subr.mxu0 0.0
    %181 = vmatpush2.msra.mxu0 0.0
    %182 = vmatprep.subr.mxu0 0.0
    %183 = vmatpush2.msra.mxu0 0.0
    %184 = vmatprep.mubr.f32.mxu0 0.0
    %185 = vmatmul.mubr.f32.gmra.mxu0 %v115
    %v186 = vpop.f32.mrf.mxu0
    %v187 = vadd.f32 %v111, %v186
    %v188 = vpop.f32.mrf.mxu0
    %189 = vmatprep.mubr.f32.mxu0 0.0
    %190 = vmatmul.mubr.f32.gmra.mxu0 %v118
    %v191 = vpop.f32.mrf.mxu0
    %v192 = vadd.f32 %v111, %v191
    %v193 = vpop.f32.mrf.mxu0
    %194 = vdwg.mxu0
    %v195 = vmax.f32 %v187, 0.0
    %v196 = vmax.f32 %v192, 0.0
    %v197 = vpack.c.bf16 %v196, %v195
    %v198 = vld [vmem:[#allocation7] sm:$0xf]
    %v199 = vld [vmem:[#allocation7 + $0x4] sm:$0xf]
    %v200 = vld [vmem:[#allocation7 + $0x8] sm:$0xf]
    %v201 = vld [vmem:[#allocation7 + $0xc] sm:$0xf]
    %v202 = vld [vmem:[#allocation7 + $0x10] sm:$0xf]
    %v203 = vld [vmem:[#allocation7 + $0x14] sm:$0xf]
    %v204 = vld [vmem:[#allocation7 + $0x18] sm:$0xf]
    %v205 = vld [vmem:[#allocation7 + $0x1c] sm:$0xf]
    %v206 = vld [vmem:[#allocation7 + $0x20] sm:$0xf]
    %v207 = vld [vmem:[#allocation7 + $0x24] sm:$0xf]
    %v208 = vld [vmem:[#allocation7 + $0x28] sm:$0xf]
    %v209 = vld [vmem:[#allocation7 + $0x2c] sm:$0xf]
    %v210 = vld [vmem:[#allocation7 + $0x30] sm:$0xf]
    %v211 = vld [vmem:[#allocation7 + $0x34] sm:$0xf]
    %v212 = vld [vmem:[#allocation7 + $0x38] sm:$0xf]
    %v213 = vld [vmem:[#allocation7 + $0x3c] sm:$0xf]
    %v214 = vld [vmem:[%s4] sm:$0x1]
    %v216 = vlaneseq
    %v217 = vshrl.u32 %v216, 7
    %v218 = vsub.s32 0, %v217
    %v219 = vrot.slane %v214, %v218
    %v237 = vunpack.c.l.b16 %v198
    %v238 = vunpack.c.l.b16 %v199
    %v239 = vunpack.c.l.b16 %v200
    %v240 = vunpack.c.l.b16 %v201
    %v241 = vunpack.c.l.b16 %v202
    %v242 = vunpack.c.l.b16 %v203
    %v243 = vunpack.c.l.b16 %v204
    %v244 = vunpack.c.l.b16 %v205
    %v245 = vunpack.c.l.b16 %v206
    %v246 = vunpack.c.l.b16 %v207
    %v247 = vunpack.c.l.b16 %v208
    %v248 = vunpack.c.l.b16 %v209
    %v249 = vunpack.c.l.b16 %v210
    %v250 = vunpack.c.l.b16 %v211
    %v251 = vunpack.c.l.b16 %v212
    %v252 = vunpack.c.l.b16 %v213
    %v253 = vpack.c.b16 %v238, %v237
    %v254 = vpack.c.b16 %v240, %v239
    %v255 = vpack.c.b16 %v242, %v241
    %v256 = vpack.c.b16 %v244, %v243
    %v257 = vpack.c.b16 %v246, %v245
    %v258 = vpack.c.b16 %v248, %v247
    %v259 = vpack.c.b16 %v250, %v249
    %v260 = vpack.c.b16 %v252, %v251
    %269 = vmatprep.subr.bf16.mxu0 0
    %270 = vmatpush1.bf16.msra.mxu0 %v260
    %271 = vmatprep.subr.bf16.mxu0 0
    %272 = vmatpush1.bf16.msra.mxu0 %v259
    %273 = vmatprep.subr.bf16.mxu0 0
    %274 = vmatpush1.bf16.msra.mxu0 %v258
    %275 = vmatprep.subr.bf16.mxu0 0
    %276 = vmatpush1.bf16.msra.mxu0 %v257
    %277 = vmatprep.subr.bf16.mxu0 0
    %278 = vmatpush1.bf16.msra.mxu0 %v256
    %279 = vmatprep.subr.bf16.mxu0 0
    %280 = vmatpush1.bf16.msra.mxu0 %v255
    %281 = vmatprep.subr.bf16.mxu0 0
    %282 = vmatpush1.bf16.msra.mxu0 %v254
    %283 = vmatprep.subr.bf16.mxu0 0
    %284 = vmatpush1.bf16.msra.mxu0 %v253
    %285 = vmatprep.subr.bf16.mxu0 0
    %286 = vmatpush2.bf16.msra.mxu0 0
    %287 = vmatprep.subr.bf16.mxu0 0
    %288 = vmatpush2.bf16.msra.mxu0 0
    %289 = vmatprep.subr.bf16.mxu0 0
    %290 = vmatpush2.bf16.msra.mxu0 0
    %291 = vmatprep.subr.bf16.mxu0 0
    %292 = vmatpush2.bf16.msra.mxu0 0
    %293 = vmatprep.subr.bf16.mxu0 0
    %294 = vmatpush2.bf16.msra.mxu0 0
    %295 = vmatprep.subr.bf16.mxu0 0
    %296 = vmatpush2.bf16.msra.mxu0 0
    %297 = vmatprep.subr.bf16.mxu0 0
    %298 = vmatpush2.bf16.msra.mxu0 0
    %299 = vmatprep.subr.bf16.mxu0 0
    %300 = vmatpush2.bf16.msra.mxu0 0
    %301 = vmatprep.mubr.bf16.mxu0 0
    %302 = vmatmul.mubr.bf16.gmra.mxu0 %v197
    %v303 = vpop.f32.mrf.mxu0
    %v304 = vadd.f32 %v219, %v303
    %v305 = vpop.f32.mrf.mxu0
    %v306 = vpop.f32.mrf.mxu0
    %v307 = vadd.f32 %v219, %v306
    %v308 = vpop.f32.mrf.mxu0
    %309 = vdwg.mxu0
    %v310 = vmax.f32 %v304, 0.0
    %v311 = vmax.f32 %v307, 0.0
    %v312 = vpack.c.bf16 %v311, %v310
    %v313 = vld [vmem:[#allocation8] sm:$0xf]
    %v314 = vld [vmem:[#allocation8 + $0x4] sm:$0xf]
    %v315 = vld [vmem:[#allocation8 + $0x8] sm:$0xf]
    %v316 = vld [vmem:[#allocation8 + $0xc] sm:$0xf]
    %v317 = vld [vmem:[#allocation8 + $0x10] sm:$0xf]
    %v318 = vld [vmem:[#allocation8 + $0x14] sm:$0xf]
    %v319 = vld [vmem:[#allocation8 + $0x18] sm:$0xf]
    %v320 = vld [vmem:[#allocation8 + $0x1c] sm:$0xf]
    %v321 = vld [vmem:[#allocation8 + $0x20] sm:$0xf]
    %v322 = vld [vmem:[#allocation8 + $0x24] sm:$0xf]
    %v323 = vld [vmem:[#allocation8 + $0x28] sm:$0xf]
    %v324 = vld [vmem:[#allocation8 + $0x2c] sm:$0xf]
    %v325 = vld [vmem:[#allocation8 + $0x30] sm:$0xf]
    %v326 = vld [vmem:[#allocation8 + $0x34] sm:$0xf]
    %v327 = vld [vmem:[#allocation8 + $0x38] sm:$0xf]
    %v328 = vld [vmem:[#allocation8 + $0x3c] sm:$0xf]
    %v329 = vld [vmem:[%s6] sm:$0x1]
    %v331 = vlaneseq
    %v332 = vshrl.u32 %v331, 7
    %v333 = vsub.s32 0, %v332
    %v334 = vrot.slane %v329, %v333
    %v352 = vunpack.c.l.b16 %v313
    %v353 = vunpack.c.l.b16 %v314
    %v354 = vunpack.c.l.b16 %v315
    %v355 = vunpack.c.l.b16 %v316
    %v356 = vunpack.c.l.b16 %v317
    %v357 = vunpack.c.l.b16 %v318
    %v358 = vunpack.c.l.b16 %v319
    %v359 = vunpack.c.l.b16 %v320
    %v360 = vunpack.c.l.b16 %v321
    %v361 = vunpack.c.l.b16 %v322
    %v362 = vunpack.c.l.b16 %v323
    %v363 = vunpack.c.l.b16 %v324
    %v364 = vunpack.c.l.b16 %v325
    %v365 = vunpack.c.l.b16 %v326
    %v366 = vunpack.c.l.b16 %v327
    %v367 = vunpack.c.l.b16 %v328
    %v368 = vpack.c.b16 %v353, %v352
    %v369 = vpack.c.b16 %v355, %v354
    %v370 = vpack.c.b16 %v357, %v356
    %v371 = vpack.c.b16 %v359, %v358
    %v372 = vpack.c.b16 %v361, %v360
    %v373 = vpack.c.b16 %v363, %v362
    %v374 = vpack.c.b16 %v365, %v364
    %v375 = vpack.c.b16 %v367, %v366
    %384 = vmatprep.subr.bf16.mxu0 0
    %385 = vmatpush1.bf16.msra.mxu0 %v375
    %386 = vmatprep.subr.bf16.mxu0 0
    %387 = vmatpush1.bf16.msra.mxu0 %v374
    %388 = vmatprep.subr.bf16.mxu0 0
    %389 = vmatpush1.bf16.msra.mxu0 %v373
    %390 = vmatprep.subr.bf16.mxu0 0
    %391 = vmatpush1.bf16.msra.mxu0 %v372
    %392 = vmatprep.subr.bf16.mxu0 0
    %393 = vmatpush1.bf16.msra.mxu0 %v371
    %394 = vmatprep.subr.bf16.mxu0 0
    %395 = vmatpush1.bf16.msra.mxu0 %v370
    %396 = vmatprep.subr.bf16.mxu0 0
    %397 = vmatpush1.bf16.msra.mxu0 %v369
    %398 = vmatprep.subr.bf16.mxu0 0
    %399 = vmatpush1.bf16.msra.mxu0 %v368
    %400 = vmatprep.subr.bf16.mxu0 0
    %401 = vmatpush2.bf16.msra.mxu0 0
    %402 = vmatprep.subr.bf16.mxu0 0
    %403 = vmatpush2.bf16.msra.mxu0 0
    %404 = vmatprep.subr.bf16.mxu0 0
    %405 = vmatpush2.bf16.msra.mxu0 0
    %406 = vmatprep.subr.bf16.mxu0 0
    %407 = vmatpush2.bf16.msra.mxu0 0
    %408 = vmatprep.subr.bf16.mxu0 0
    %409 = vmatpush2.bf16.msra.mxu0 0
    %410 = vmatprep.subr.bf16.mxu0 0
    %411 = vmatpush2.bf16.msra.mxu0 0
    %412 = vmatprep.subr.bf16.mxu0 0
    %413 = vmatpush2.bf16.msra.mxu0 0
    %414 = vmatprep.subr.bf16.mxu0 0
    %415 = vmatpush2.bf16.msra.mxu0 0
    %416 = vmatprep.mubr.bf16.mxu0 0
    %417 = vmatmul.mubr.bf16.gmra.mxu0 %v312
    %v418 = vpop.f32.mrf.mxu0
    %v419 = vadd.f32 %v334, %v418
    %v420 = vpop.f32.mrf.mxu0
    %v421 = vpop.f32.mrf.mxu0
    %v422 = vadd.f32 %v334, %v421
    %v423 = vpop.f32.mrf.mxu0
    %424 = vdwg.mxu0
    %v425 = vmax.f32 %v419, 0.0
    %v426 = vmax.f32 %v422, 0.0
    %v427 = vpack.c.bf16 %v426, %v425
    %v428 = vld [vmem:[#allocation10] sm:$0xf]
    %v429 = vld [vmem:[#allocation10 + $0x4] sm:$0xf]
    %v430 = vld [vmem:[#allocation10 + $0x8] sm:$0xf]
    %v431 = vld [vmem:[#allocation10 + $0xc] sm:$0xf]
    %v432 = vld [vmem:[#allocation10 + $0x10] sm:$0xf]
    %v433 = vld [vmem:[#allocation10 + $0x14] sm:$0xf]
    %v434 = vld [vmem:[#allocation10 + $0x18] sm:$0xf]
    %v435 = vld [vmem:[#allocation10 + $0x1c] sm:$0xf]
    %v436 = vld [vmem:[#allocation10 + $0x20] sm:$0xf]
    %v437 = vld [vmem:[#allocation10 + $0x24] sm:$0xf]
    %v438 = vld [vmem:[#allocation10 + $0x28] sm:$0xf]
    %v439 = vld [vmem:[#allocation10 + $0x2c] sm:$0xf]
    %v440 = vld [vmem:[#allocation10 + $0x30] sm:$0xf]
    %v441 = vld [vmem:[#allocation10 + $0x34] sm:$0xf]
    %v442 = vld [vmem:[#allocation10 + $0x38] sm:$0xf]
    %v443 = vld [vmem:[#allocation10 + $0x3c] sm:$0xf]
    %v444 = vld [vmem:[%s8] sm:$0x1]
    %v446 = vlaneseq
    %v447 = vshrl.u32 %v446, 7
    %v448 = vsub.s32 0, %v447
    %v449 = vrot.slane %v444, %v448
    %v467 = vunpack.c.l.b16 %v428
    %v468 = vunpack.c.l.b16 %v429
    %v469 = vunpack.c.l.b16 %v430
    %v470 = vunpack.c.l.b16 %v431
    %v471 = vunpack.c.l.b16 %v432
    %v472 = vunpack.c.l.b16 %v433
    %v473 = vunpack.c.l.b16 %v434
    %v474 = vunpack.c.l.b16 %v435
    %v475 = vunpack.c.l.b16 %v436
    %v476 = vunpack.c.l.b16 %v437
    %v477 = vunpack.c.l.b16 %v438
    %v478 = vunpack.c.l.b16 %v439
    %v479 = vunpack.c.l.b16 %v440
    %v480 = vunpack.c.l.b16 %v441
    %v481 = vunpack.c.l.b16 %v442
    %v482 = vunpack.c.l.b16 %v443
    %v483 = vpack.c.b16 %v468, %v467
    %v484 = vpack.c.b16 %v470, %v469
    %v485 = vpack.c.b16 %v472, %v471
    %v486 = vpack.c.b16 %v474, %v473
    %v487 = vpack.c.b16 %v476, %v475
    %v488 = vpack.c.b16 %v478, %v477
    %v489 = vpack.c.b16 %v480, %v479
    %v490 = vpack.c.b16 %v482, %v481
    %499 = vmatprep.subr.bf16.mxu0 0
    %500 = vmatpush1.bf16.msra.mxu0 %v490
    %501 = vmatprep.subr.bf16.mxu0 0
    %502 = vmatpush1.bf16.msra.mxu0 %v489
    %503 = vmatprep.subr.bf16.mxu0 0
    %504 = vmatpush1.bf16.msra.mxu0 %v488
    %505 = vmatprep.subr.bf16.mxu0 0
    %506 = vmatpush1.bf16.msra.mxu0 %v487
    %507 = vmatprep.subr.bf16.mxu0 0
    %508 = vmatpush1.bf16.msra.mxu0 %v486
    %509 = vmatprep.subr.bf16.mxu0 0
    %510 = vmatpush1.bf16.msra.mxu0 %v485
    %511 = vmatprep.subr.bf16.mxu0 0
    %512 = vmatpush1.bf16.msra.mxu0 %v484
    %513 = vmatprep.subr.bf16.mxu0 0
    %514 = vmatpush1.bf16.msra.mxu0 %v483
    %515 = vmatprep.subr.bf16.mxu0 0
    %516 = vmatpush2.bf16.msra.mxu0 0
    %517 = vmatprep.subr.bf16.mxu0 0
    %518 = vmatpush2.bf16.msra.mxu0 0
    %519 = vmatprep.subr.bf16.mxu0 0
    %520 = vmatpush2.bf16.msra.mxu0 0
    %521 = vmatprep.subr.bf16.mxu0 0
    %522 = vmatpush2.bf16.msra.mxu0 0
    %523 = vmatprep.subr.bf16.mxu0 0
    %524 = vmatpush2.bf16.msra.mxu0 0
    %525 = vmatprep.subr.bf16.mxu0 0
    %526 = vmatpush2.bf16.msra.mxu0 0
    %527 = vmatprep.subr.bf16.mxu0 0
    %528 = vmatpush2.bf16.msra.mxu0 0
    %529 = vmatprep.subr.bf16.mxu0 0
    %530 = vmatpush2.bf16.msra.mxu0 0
    %531 = vmatprep.mubr.bf16.mxu0 0
    %532 = vmatmul.mubr.bf16.gmra.mxu0 %v427
    %v533 = vpop.f32.mrf.mxu0
    %v534 = vadd.f32 %v449, %v533
    %v535 = vpop.f32.mrf.mxu0
    %v536 = vpop.f32.mrf.mxu0
    %v537 = vadd.f32 %v449, %v536
    %v538 = vpop.f32.mrf.mxu0
    %539 = vdwg.mxu0
    %540 = vst [vmem:[#allocation11] sm:$0xff] %v534
    %541 = vst [vmem:[#allocation11 + $0x8] sm:$0xff] %v537
    // Predicated region
    $region58: #{tpu_custom_call.1} parent=1 // pred_check
      _
    $region59: #{tpu_custom_call.1} parent=1 // pred_check_branch
      %543 = sbr.rel (0) target = $region61
    $region60: #{tpu_custom_call.1} parent=1 // pred_region
      %s545 = ssub.s32 256, 256
      %546 = vsyncadd [#allocation4], %s545
      %s547 = sshll.u32 [#allocation11], 4
      %s548 = int_to_ptr.vmem [resolvable:$true] %s547
      %553 = dma.vmem_to_hbm [thread:$0]  %s548, 256, %s9, [#allocation4], 128, 128, 8
    $region61: #{tpu_custom_call.1} parent=1 // pred_fallthru
      _
    // Predicated region
    $region62: #{tpu_custom_call.1} parent=1 // pred_check
      _
    $region63: #{tpu_custom_call.1} parent=1 // pred_check_branch
      %555 = sbr.rel (0) target = $region65
    $region64: #{tpu_custom_call.1} parent=1 // pred_region
      %556 = dma.done [#allocation4], 256
    $region65: #{tpu_custom_call.1} parent=1 // pred_fallthru
      _
    %557 = vsyncpa [#allocation3], 1
    %558 = vsyncpa [#allocation6], 1
    %559 = vsyncpa [#allocation9], 1
    %560 = vsyncpa [#allocation4], 1

</llo_original>
